<compile_context>
chip_gen: v5e
topology: v5e:2x2
jax: 0.10.0
libtpu: 0.0.40
codegen_flags: <defaults>
</compile_context>

<pallas_src>
import functools

import jax
import jax.numpy as jnp
from jax.experimental import pallas as pl
from jax.experimental.pallas import tpu as pltpu


def _wo1_mixing_kernel(x_ref, wmap_ref, bmap_ref, gsum_ref, bcast_ref,
                       w1s_ref, b1s_ref, v_ref, wsel_ref, scal_ref, out_ref,
                       *, fmap, eh, eps):
    x2 = x_ref[...]                                           # (TB, D)

    # --- mapping layers (all map_num linears fused) + folded wp_x column ----
    mf = (jnp.dot(x2, wmap_ref[...], preferred_element_type=jnp.float32)
          + bmap_ref[...])                                    # (TB, Fmap+1)
    m = jax.nn.sigmoid(mf[:, :fmap])                          # (TB, Fmap)
    zx = mf[:, fmap:fmap + 1]                                 # (TB, 1) = x @ wp_x

    # --- BatchNorm2d(time_len, eps=Fmap): per-time stats over (B, Fmap) -----
    # Row sums / sums of squares (XLU), then one stacked group-mean matmul.
    # One-pass E[m^2]-mu^2 is safe here: m is a sigmoid output in (0,1) and
    # eps is huge (=Fmap), so cancellation is a non-issue.
    rs = jnp.sum(m, axis=1, keepdims=True)                    # (TB, 1)
    rs2 = jnp.sum(m * m, axis=1, keepdims=True)               # (TB, 1)
    stats = jnp.concatenate([rs, rs2], axis=1)                # (TB, 2)
    per_t = jnp.dot(gsum_ref[...], stats,
                    preferred_element_type=jnp.float32)       # (T, 2)  group means
    full = jnp.dot(bcast_ref[...], per_t,
                   preferred_element_type=jnp.float32)        # (TB, 2) broadcast back
    mu = full[:, 0:1]
    var = full[:, 1:2] - mu * mu                              # biased variance
    m_bn = (m - mu) * jax.lax.rsqrt(var + eps)                # (TB, Fmap)

    # --- enhancement first layers fused + folded wp_m column ---------------
    hf = (jnp.dot(m_bn, w1s_ref[...], preferred_element_type=jnp.float32)
          + b1s_ref[...])                                     # (TB, E*H+1)
    h = jnp.maximum(hf[:, :eh], 0.0)                          # (TB, E*H)
    zm = hf[:, eh:eh + 1]                                     # (TB, 1) = m_bn @ wp_m

    # --- dense_predict folded: pred = zx + zm + h@v + const ----------------
    z = zx + zm + jnp.dot(h, v_ref[...],
                          preferred_element_type=jnp.float32)  # (TB, 1)

    # --- dense_time folded into a (B, TB) selector: out = Wsel @ z + scal ---
    out_ref[...] = (jnp.dot(wsel_ref[...], z,
                            preferred_element_type=jnp.float32)
                    + scal_ref[0])                            # (B, 1)


def prepare_wo1_mixing_params(params, B, T):
    """One-time, parameter-only preprocessing (hoisted out of the hot path)."""
    (W_map, b_map, W1, b1, W2, b2, wp, bp, wt, bt) = params
    D, Fmap = W_map.shape
    E, _, H = W1.shape
    EF = W2.shape[2]
    EH = E * H
    TB = B * T
    f32 = jnp.float32
    n = float(B * Fmap)          # BN reduction size per time step

    wp_vec = wp[:, 0]
    wp_x = wp_vec[:D].reshape(D, 1)
    wp_m = wp_vec[D:D + Fmap].reshape(Fmap, 1)
    wp_e = wp_vec[D + Fmap:].reshape(E, EF)

    # Mapping weights with wp_x folded in as an extra output column.
    W_map_aug = jnp.concatenate([W_map, wp_x], axis=1).astype(f32)       # (D, Fmap+1)
    b_map_aug = jnp.concatenate([b_map.reshape(1, Fmap),
                                 jnp.zeros((1, 1), f32)], axis=1)        # (1, Fmap+1)

    # Enhancement first layers stacked, with wp_m folded as an extra column.
    W1s_aug = jnp.concatenate([W1[e] for e in range(E)] + [wp_m],
                              axis=1).astype(f32)                        # (Fmap, EH+1)
    b1s_aug = jnp.concatenate([b1.reshape(1, EH),
                               jnp.zeros((1, 1), f32)], axis=1)          # (1, EH+1)

    # Second enhancement layers folded with dense_predict: v_j = W2_j @ wp_j.
    v = jnp.einsum('ehk,ek->eh', W2, wp_e).reshape(EH, 1).astype(f32)    # (EH, 1)
    bias_const = bp[0] + jnp.sum(b2 * wp_e)

    # Factored BN group-mean (batch-major rows b*T + t):
    #   per_t = Gsum @ rowstats   (Gsum already / n)
    #   full  = Bcast @ per_t
    Gsum = (jnp.kron(jnp.ones((1, B), f32), jnp.eye(T, dtype=f32)) / n)  # (T, TB)
    Bcast = jnp.kron(jnp.ones((B, 1), f32), jnp.eye(T, dtype=f32))       # (TB, T)

    # dense_time selector: Wsel[b, b'*T+t] = delta_{b,b'} * wt[t]
    Wsel = jnp.kron(jnp.eye(B, dtype=f32), wt[None, :].astype(f32))      # (B, TB)

    # Scalar offset: bt + (bp + sum_j b2_j . wp_e_j) * sum_t wt[t]
    scal = (bt[0] + bias_const * jnp.sum(wt)).reshape(1).astype(f32)     # (1,)

    return (W_map_aug, b_map_aug, Gsum, Bcast, W1s_aug, b1s_aug, v, Wsel, scal)


@jax.jit
def wo1_mixing_forward(x_btd, prepared):
    (W_map_aug, b_map_aug, Gsum, Bcast, W1s_aug, b1s_aug, v, Wsel, scal) = prepared
    B, T, D = x_btd.shape
    Fmap = W1s_aug.shape[0]
    EH = W1s_aug.shape[1] - 1
    TB = B * T
    eps = float(Fmap)            # BatchNorm2d(time_len, map_fea_num*map_num)

    # Batch-major rows: row (b*T + t) = x[b, t, :]  (metadata-only reshape).
    x_rows = x_btd.reshape(TB, D)

    kernel = functools.partial(_wo1_mixing_kernel, fmap=Fmap, eh=EH, eps=eps)

    # Single invocation, no grid: every operand lives as a whole array in
    # VMEM (a few KB here).  For much larger B*T the next step would be to
    # tile over whole-time-step row blocks (parallel grid axis -> 2 TCs on
    # v7x); not needed at these shapes.
    out = pl.pallas_call(
        kernel,
        out_shape=jax.ShapeDtypeStruct((B, 1), jnp.float32),
        in_specs=[
            pl.BlockSpec(memory_space=pltpu.VMEM),    # x rows        (TB, D)
            pl.BlockSpec(memory_space=pltpu.VMEM),    # W_map_aug     (D, Fmap+1)
            pl.BlockSpec(memory_space=pltpu.VMEM),    # b_map_aug     (1, Fmap+1)
            pl.BlockSpec(memory_space=pltpu.VMEM),    # Gsum          (T, TB)
            pl.BlockSpec(memory_space=pltpu.VMEM),    # Bcast         (TB, T)
            pl.BlockSpec(memory_space=pltpu.VMEM),    # W1s_aug       (Fmap, EH+1)
            pl.BlockSpec(memory_space=pltpu.VMEM),    # b1s_aug       (1, EH+1)
            pl.BlockSpec(memory_space=pltpu.VMEM),    # v             (EH, 1)
            pl.BlockSpec(memory_space=pltpu.VMEM),    # Wsel          (B, TB)
            pl.BlockSpec(memory_space=pltpu.SMEM),    # scal          (1,)
        ],
        out_specs=pl.BlockSpec(memory_space=pltpu.VMEM),
    )(x_rows, W_map_aug, b_map_aug, Gsum, Bcast, W1s_aug, b1s_aug, v, Wsel, scal)
    return out


def reference_forward(x_btd, params):
    """Pure-JAX reference of the PyTorch module forward (train-mode BN)."""
    (W_map, b_map, W1, b1, W2, b2, wp, bp, wt, bt) = params
    Fmap = W_map.shape[1]
    E = W1.shape[0]
    eps = float(Fmap)
    m = jax.nn.sigmoid(jnp.einsum('btd,df->btf', x_btd, W_map) + b_map[0])
    mu = jnp.mean(m, axis=(0, 2), keepdims=True)
    var = jnp.mean((m - mu) ** 2, axis=(0, 2), keepdims=True)
    m_bn = (m - mu) / jnp.sqrt(var + eps)
    feats = [x_btd, m_bn]
    for e in range(E):
        h = jax.nn.relu(jnp.einsum('btf,fh->bth', m_bn, W1[e]) + b1[e])
        feats.append(jnp.einsum('bth,hk->btk', h, W2[e]) + b2[e])
    resid = jnp.concatenate(feats, axis=-1)
    pred = jnp.einsum('btf,f->bt', resid, wp[:, 0]) + bp[0]   # (B, T)
    out = pred @ wt + bt[0]                                   # (B,)
    return out[:, None]


if __name__ == "__main__":
    # Small shapes consistent with the module's forward:
    B = 4            # batch
    T = 8            # time_len
    D = 8            # input_dim
    map_fea_num = 8
    map_num = 4
    enh_fea_num = 8
    enh_num = 2
    hidden_dim1 = 32
    Fmap = map_fea_num * map_num
    Dres = D + Fmap + enh_num * enh_fea_num

    key = jax.random.PRNGKey(0)
    ks = jax.random.split(key, 11)
    f32 = jnp.float32
    x = jax.random.normal(ks[0], (B, T, D), dtype=f32)

    params = (
        jax.random.normal(ks[1], (D, Fmap), dtype=f32) * 0.1,                        # W_map (stacked)
        jax.random.normal(ks[2], (1, Fmap), dtype=f32) * 0.1,                        # b_map
        jax.random.normal(ks[3], (enh_num, Fmap, hidden_dim1), dtype=f32) * 0.1,     # W1
        jax.random.normal(ks[4], (enh_num, hidden_dim1), dtype=f32) * 0.1,           # b1
        jax.random.normal(ks[5], (enh_num, hidden_dim1, enh_fea_num), dtype=f32) * 0.1,  # W2
        jax.random.normal(ks[6], (enh_num, enh_fea_num), dtype=f32) * 0.1,           # b2
        jax.random.normal(ks[7], (Dres, 1), dtype=f32) * 0.1,                        # dense_predict W
        jax.random.normal(ks[8], (1,), dtype=f32) * 0.1,                             # dense_predict b
        jax.random.normal(ks[9], (T,), dtype=f32) * 0.1,                             # dense_time W
        jax.random.normal(ks[10], (1,), dtype=f32) * 0.1,                            # dense_time b
    )

    # One-time preprocessing (out of the hot path).
    prepared = prepare_wo1_mixing_params(params, B, T)
    prepared = jax.block_until_ready(prepared)

    out = wo1_mixing_forward(x, prepared)
    out = jax.block_until_ready(out)

    ref = reference_forward(x, params)
    assert out.shape == (B, 1), out.shape
    assert jnp.allclose(out, ref, atol=1e-4, rtol=1e-4), (out, ref)

    print("KERNEL_OK")
</pallas_src>

<mosaic_0001>
module attributes {stable_mosaic.version = 11 : i64} {
  func.func @_wo1_mixing_kernel(%arg0: memref<32x8xf32, #tpu.memory_space<vmem>>, %arg1: memref<8x33xf32, #tpu.memory_space<vmem>>, %arg2: memref<1x33xf32, #tpu.memory_space<vmem>>, %arg3: memref<8x32xf32, #tpu.memory_space<vmem>>, %arg4: memref<32x8xf32, #tpu.memory_space<vmem>>, %arg5: memref<32x65xf32, #tpu.memory_space<vmem>>, %arg6: memref<1x65xf32, #tpu.memory_space<vmem>>, %arg7: memref<64x1xf32, #tpu.memory_space<vmem>>, %arg8: memref<4x32xf32, #tpu.memory_space<vmem>>, %arg9: memref<1xf32, #tpu.memory_space<smem>>, %arg10: memref<4x1xf32, #tpu.memory_space<vmem>>) attributes {dimension_semantics = [], scalar_prefetch = 0 : i64, scratch_operands = 0 : i64, tpu.core_type = #tpu.core_type<tc>} {
    %c0 = arith.constant 0 : index
    %c0_0 = arith.constant 0 : index
    %0 = vector.load %arg0[%c0, %c0_0] : memref<32x8xf32, #tpu.memory_space<vmem>>, vector<32x8xf32>
    %c0_1 = arith.constant 0 : index
    %c0_2 = arith.constant 0 : index
    %1 = vector.load %arg1[%c0_1, %c0_2] : memref<8x33xf32, #tpu.memory_space<vmem>>, vector<8x33xf32>
    %cst = arith.constant dense<0.000000e+00> : vector<32x33xf32>
    %2 = tpu.matmul %0, %1, %cst {dimension_numbers = #tpu.dot_dimension_numbers<[1], [0], [0], [1], [0, 0, 1, 1], [], []>} : vector<32x8xf32>, vector<8x33xf32>, vector<32x33xf32> -> vector<32x33xf32>
    %c0_3 = arith.constant 0 : index
    %c0_4 = arith.constant 0 : index
    %3 = vector.load %arg2[%c0_3, %c0_4] : memref<1x33xf32, #tpu.memory_space<vmem>>, vector<1x33xf32>
    %4 = vector.broadcast %3 : vector<1x33xf32> to vector<32x33xf32>
    %5 = arith.addf %2, %4 : vector<32x33xf32>
    %6 = vector.extract_strided_slice %5 {offsets = [0, 0], sizes = [32, 32], strides = [1, 1]} : vector<32x33xf32> to vector<32x32xf32>
    %7 = arith.negf %6 : vector<32x32xf32>
    %8 = math.exp %7 : vector<32x32xf32>
    %cst_5 = arith.constant 1.000000e+00 : f32
    %9 = vector.broadcast %cst_5 : f32 to vector<32x32xf32>
    %10 = arith.addf %9, %8 : vector<32x32xf32>
    %11 = arith.divf %9, %10 : vector<32x32xf32>
    %12 = vector.extract_strided_slice %5 {offsets = [0, 32], sizes = [32, 1], strides = [1, 1]} : vector<32x33xf32> to vector<32x1xf32>
    %cst_6 = arith.constant dense<0.000000e+00> : vector<32xf32>
    %13 = vector.multi_reduction <add>, %11, %cst_6 [1] : vector<32x32xf32> to vector<32xf32>
    %14 = vector.shape_cast %13 : vector<32xf32> to vector<32x1xf32>
    %15 = arith.mulf %11, %11 : vector<32x32xf32>
    %cst_7 = arith.constant dense<0.000000e+00> : vector<32xf32>
    %16 = vector.multi_reduction <add>, %15, %cst_7 [1] : vector<32x32xf32> to vector<32xf32>
    %17 = vector.shape_cast %16 : vector<32xf32> to vector<32x1xf32>
    %18 = tpu.concatenate %14, %17 in 1 : vector<32x1xf32>, vector<32x1xf32> -> vector<32x2xf32>
    %c0_8 = arith.constant 0 : index
    %c0_9 = arith.constant 0 : index
    %19 = vector.load %arg3[%c0_8, %c0_9] : memref<8x32xf32, #tpu.memory_space<vmem>>, vector<8x32xf32>
    %cst_10 = arith.constant dense<0.000000e+00> : vector<8x2xf32>
    %20 = tpu.matmul %19, %18, %cst_10 {dimension_numbers = #tpu.dot_dimension_numbers<[1], [0], [0], [1], [0, 0, 1, 1], [], []>} : vector<8x32xf32>, vector<32x2xf32>, vector<8x2xf32> -> vector<8x2xf32>
    %c0_11 = arith.constant 0 : index
    %c0_12 = arith.constant 0 : index
    %21 = vector.load %arg4[%c0_11, %c0_12] : memref<32x8xf32, #tpu.memory_space<vmem>>, vector<32x8xf32>
    %cst_13 = arith.constant dense<0.000000e+00> : vector<32x2xf32>
    %22 = tpu.matmul %21, %20, %cst_13 {dimension_numbers = #tpu.dot_dimension_numbers<[1], [0], [0], [1], [0, 0, 1, 1], [], []>} : vector<32x8xf32>, vector<8x2xf32>, vector<32x2xf32> -> vector<32x2xf32>
    %23 = vector.extract_strided_slice %22 {offsets = [0, 0], sizes = [32, 1], strides = [1, 1]} : vector<32x2xf32> to vector<32x1xf32>
    %24 = vector.extract_strided_slice %22 {offsets = [0, 1], sizes = [32, 1], strides = [1, 1]} : vector<32x2xf32> to vector<32x1xf32>
    %25 = arith.mulf %23, %23 : vector<32x1xf32>
    %26 = arith.subf %24, %25 : vector<32x1xf32>
    %27 = vector.broadcast %23 : vector<32x1xf32> to vector<32x32xf32>
    %28 = arith.subf %11, %27 : vector<32x32xf32>
    %cst_14 = arith.constant 3.200000e+01 : f32
    %29 = vector.broadcast %cst_14 : f32 to vector<32x1xf32>
    %30 = arith.addf %26, %29 : vector<32x1xf32>
    %31 = math.rsqrt %30 : vector<32x1xf32>
    %32 = vector.broadcast %31 : vector<32x1xf32> to vector<32x32xf32>
    %33 = arith.mulf %28, %32 : vector<32x32xf32>
    %c0_15 = arith.constant 0 : index
    %c0_16 = arith.constant 0 : index
    %34 = vector.load %arg5[%c0_15, %c0_16] : memref<32x65xf32, #tpu.memory_space<vmem>>, vector<32x65xf32>
    %cst_17 = arith.constant dense<0.000000e+00> : vector<32x65xf32>
    %35 = tpu.matmul %33, %34, %cst_17 {dimension_numbers = #tpu.dot_dimension_numbers<[1], [0], [0], [1], [0, 0, 1, 1], [], []>} : vector<32x32xf32>, vector<32x65xf32>, vector<32x65xf32> -> vector<32x65xf32>
    %c0_18 = arith.constant 0 : index
    %c0_19 = arith.constant 0 : index
    %36 = vector.load %arg6[%c0_18, %c0_19] : memref<1x65xf32, #tpu.memory_space<vmem>>, vector<1x65xf32>
    %37 = vector.broadcast %36 : vector<1x65xf32> to vector<32x65xf32>
    %38 = arith.addf %35, %37 : vector<32x65xf32>
    %39 = vector.extract_strided_slice %38 {offsets = [0, 0], sizes = [32, 64], strides = [1, 1]} : vector<32x65xf32> to vector<32x64xf32>
    %cst_20 = arith.constant 0.000000e+00 : f32
    %40 = vector.broadcast %cst_20 : f32 to vector<32x64xf32>
    %41 = arith.maximumf %39, %40 : vector<32x64xf32>
    %42 = vector.extract_strided_slice %38 {offsets = [0, 64], sizes = [32, 1], strides = [1, 1]} : vector<32x65xf32> to vector<32x1xf32>
    %43 = arith.addf %12, %42 : vector<32x1xf32>
    %c0_21 = arith.constant 0 : index
    %c0_22 = arith.constant 0 : index
    %44 = vector.load %arg7[%c0_21, %c0_22] : memref<64x1xf32, #tpu.memory_space<vmem>>, vector<64x1xf32>
    %cst_23 = arith.constant dense<0.000000e+00> : vector<32x1xf32>
    %45 = tpu.matmul %41, %44, %cst_23 {dimension_numbers = #tpu.dot_dimension_numbers<[1], [0], [0], [1], [0, 0, 1, 1], [], []>} : vector<32x64xf32>, vector<64x1xf32>, vector<32x1xf32> -> vector<32x1xf32>
    %46 = arith.addf %43, %45 : vector<32x1xf32>
    %c0_24 = arith.constant 0 : index
    %c0_25 = arith.constant 0 : index
    %47 = vector.load %arg8[%c0_24, %c0_25] : memref<4x32xf32, #tpu.memory_space<vmem>>, vector<4x32xf32>
    %cst_26 = arith.constant dense<0.000000e+00> : vector<4x1xf32>
    %48 = tpu.matmul %47, %46, %cst_26 {dimension_numbers = #tpu.dot_dimension_numbers<[1], [0], [0], [1], [0, 0, 1, 1], [], []>} : vector<4x32xf32>, vector<32x1xf32>, vector<4x1xf32> -> vector<4x1xf32>
    %c0_27 = arith.constant 0 : index
    %49 = memref.load %arg9[%c0_27] : memref<1xf32, #tpu.memory_space<smem>>
    %50 = vector.broadcast %49 : f32 to vector<4x1xf32>
    %51 = arith.addf %48, %50 : vector<4x1xf32>
    %c0_28 = arith.constant 0 : index
    %c0_29 = arith.constant 0 : index
    %52 = vector.load %arg10[%c0_28, %c0_29] : memref<4x1xf32, #tpu.memory_space<vmem>>, vector<4x1xf32>
    tpu.vector_store %arg10[%c0_28, %c0_29], %51 {strides = array<i32>} : memref<4x1xf32, #tpu.memory_space<vmem>>, vector<4x1xf32>,
    return
  }
}

</mosaic_0001>

<llo_original>
// kernel: wo1_mixing_forward.1
$region0: #{wo1_mixing_forward.1}
  #allocation0 [shape = 'u32[]', space=smem, size = 0x4, offset = 0x4, fixed_abs, tag = 'smem constant byte address 0x4 - core index']
  #allocation1 [shape = 'u32[72,128]{1,0:T(1,128)}', space=vmem, size = 0x9000, scoped, tag = 'internal scratch']
  #allocation2 [shape = 'f32[1]{0:T(128)S(6)}', space=smem, size = 0x200, scoped, tag = 'scoped memory for wo1_mixing_forward.1']
  %s0 = inlined_call_operand.vmem [shape: f32[32,8], index: 0, kind: input, shape index: {}]
  %s1 = inlined_call_operand.vmem [shape: f32[8,33], index: 1, kind: input, shape index: {}]
  %s2 = inlined_call_operand.vmem [shape: f32[1,33], index: 2, kind: input, shape index: {}]
  %s3 = inlined_call_operand.vmem [shape: f32[8,32], index: 3, kind: input, shape index: {}]
  %s4 = inlined_call_operand.vmem [shape: f32[32,8], index: 4, kind: input, shape index: {}]
  %s5 = inlined_call_operand.vmem [shape: f32[32,65], index: 5, kind: input, shape index: {}]
  %s6 = inlined_call_operand.vmem [shape: f32[1,65], index: 6, kind: input, shape index: {}]
  %s7 = inlined_call_operand.vmem [shape: f32[64,1], index: 7, kind: input, shape index: {}]
  %s8 = inlined_call_operand.vmem [shape: f32[4,32], index: 8, kind: input, shape index: {}]
  %s9 = inlined_call_operand.<no memory space> [shape: f32[1], index: 9, kind: input, shape index: {}]
  %s10 = inlined_call_operand.vmem [shape: f32[4,1], index: 10, kind: output, shape index: {}]
  %s11 = sld [smem:[#allocation0]]
  $region50: #{wo1_mixing_forward.1} parent=0
    _
  %s13 = ssub.s32 1, %s11
  %s14 = scalar_select 0, %s13, %s11
  %15 = sst [smem:[#allocation2]] %s9
  // Predicated region
  $region2: #{wo1_mixing_forward.1} parent=0 // pred_check
    _
  $region3: #{wo1_mixing_forward.1} parent=0 // pred_check_branch
    %17 = sbr.rel (0) target = $region5
  $region4: #{wo1_mixing_forward.1} parent=0 // pred_region
    _
  $region5: #{wo1_mixing_forward.1} parent=0 // pred_fallthru
    _
  // Predicated region
  $region6: #{wo1_mixing_forward.1} parent=0 // pred_check
    _
  $region7: #{wo1_mixing_forward.1} parent=0 // pred_check_branch
    %19 = sbr.rel (0) target = $region9
  $region8: #{wo1_mixing_forward.1} parent=0 // pred_region
    _
  $region9: #{wo1_mixing_forward.1} parent=0 // pred_fallthru
    _
  // Predicated region
  $region10: #{wo1_mixing_forward.1} parent=0 // pred_check
    _
  $region11: #{wo1_mixing_forward.1} parent=0 // pred_check_branch
    %21 = sbr.rel (0) target = $region13
  $region12: #{wo1_mixing_forward.1} parent=0 // pred_region
    _
  $region13: #{wo1_mixing_forward.1} parent=0 // pred_fallthru
    _
  // Predicated region
  $region14: #{wo1_mixing_forward.1} parent=0 // pred_check
    _
  $region15: #{wo1_mixing_forward.1} parent=0 // pred_check_branch
    %23 = sbr.rel (0) target = $region17
  $region16: #{wo1_mixing_forward.1} parent=0 // pred_region
    _
  $region17: #{wo1_mixing_forward.1} parent=0 // pred_fallthru
    _
  // Predicated region
  $region18: #{wo1_mixing_forward.1} parent=0 // pred_check
    _
  $region19: #{wo1_mixing_forward.1} parent=0 // pred_check_branch
    %25 = sbr.rel (0) target = $region21
  $region20: #{wo1_mixing_forward.1} parent=0 // pred_region
    _
  $region21: #{wo1_mixing_forward.1} parent=0 // pred_fallthru
    _
  // Predicated region
  $region22: #{wo1_mixing_forward.1} parent=0 // pred_check
    _
  $region23: #{wo1_mixing_forward.1} parent=0 // pred_check_branch
    %27 = sbr.rel (0) target = $region25
  $region24: #{wo1_mixing_forward.1} parent=0 // pred_region
    _
  $region25: #{wo1_mixing_forward.1} parent=0 // pred_fallthru
    _
  // Predicated region
  $region26: #{wo1_mixing_forward.1} parent=0 // pred_check
    _
  $region27: #{wo1_mixing_forward.1} parent=0 // pred_check_branch
    %29 = sbr.rel (0) target = $region29
  $region28: #{wo1_mixing_forward.1} parent=0 // pred_region
    _
  $region29: #{wo1_mixing_forward.1} parent=0 // pred_fallthru
    _
  // Predicated region
  $region30: #{wo1_mixing_forward.1} parent=0 // pred_check
    _
  $region31: #{wo1_mixing_forward.1} parent=0 // pred_check_branch
    %31 = sbr.rel (0) target = $region33
  $region32: #{wo1_mixing_forward.1} parent=0 // pred_region
    _
  $region33: #{wo1_mixing_forward.1} parent=0 // pred_fallthru
    _
  // Predicated region
  $region34: #{wo1_mixing_forward.1} parent=0 // pred_check
    _
  $region35: #{wo1_mixing_forward.1} parent=0 // pred_check_branch
    %33 = sbr.rel (0) target = $region37
  $region36: #{wo1_mixing_forward.1} parent=0 // pred_region
    _
  $region37: #{wo1_mixing_forward.1} parent=0 // pred_fallthru
    _
  // Predicated region
  $region38: #{wo1_mixing_forward.1} parent=0 // pred_check
    _
  $region39: #{wo1_mixing_forward.1} parent=0 // pred_check_branch
    %35 = sbr.rel (0) target = $region41
  $region40: #{wo1_mixing_forward.1} parent=0 // pred_region
    _
  $region41: #{wo1_mixing_forward.1} parent=0 // pred_fallthru
    _
  %v36 = vld [vmem:[%s0] sm:$0xff]
  %v37 = vld [vmem:[%s0 + $0x8] sm:$0xff]
  %v38 = vld [vmem:[%s0 + $0x10] sm:$0xff]
  %v39 = vld [vmem:[%s0 + $0x18] sm:$0xff]
  %v40 = vld [vmem:[%s1] sm:$0xff]
  %v41 = vld [vmem:[%s2] sm:$0x1]
  %v43 = vperm.slane %v41, 0
  %vm45 = vcmask 64512
  %v47 = vsel %vm45, %v36, 0
  %v50 = vsel %vm45, %v37, 0
  %v53 = vsel %vm45, %v38, 0
  %v56 = vsel %vm45, %v39, 0
  %58 = vmatpush.msra.mxu0 0.0
  %59 = vmatpush.msra.mxu0 0.0
  %60 = vmatpush.msra.mxu0 0.0
  %61 = vmatpush.msra.mxu0 0.0
  %62 = vmatpush.msra.mxu0 0.0
  %63 = vmatpush.msra.mxu0 0.0
  %64 = vmatpush.msra.mxu0 0.0
  %65 = vmatpush.msra.mxu0 0.0
  %66 = vmatpush.msra.mxu0 0.0
  %67 = vmatpush.msra.mxu0 0.0
  %68 = vmatpush.msra.mxu0 0.0
  %69 = vmatpush.msra.mxu0 0.0
  %70 = vmatpush.msra.mxu0 0.0
  %71 = vmatpush.msra.mxu0 0.0
  %72 = vmatpush.msra.mxu0 0.0
  %73 = vmatpush.msra.mxu0 %v40
  %74 = vmatmul.f32.gmra.mxu0 %v47
  %v75 = vpop.f32.mrf.mxu0
  %v76 = vadd.f32 %v43, %v75
  %77 = vmatmul.f32.gmra.mxu0 %v50
  %v78 = vpop.f32.mrf.mxu0
  %v79 = vadd.f32 %v43, %v78
  %80 = vmatmul.f32.gmra.mxu0 %v53
  %v81 = vpop.f32.mrf.mxu0
  %v82 = vadd.f32 %v43, %v81
  %83 = vmatmul.f32.gmra.mxu0 %v56
  %v84 = vpop.f32.mrf.mxu0
  %v85 = vadd.f32 %v43, %v84
  %86 = vdwg.mxu0
  %v87 = vxor.u32 %v76, 2147483648
  %v88 = vxor.u32 %v79, 2147483648
  %v89 = vxor.u32 %v82, 2147483648
  %v90 = vxor.u32 %v85, 2147483648
  %v91 = vmul.f32 %v87, 1.442695
  %v92 = vpow.pop %v91
  %v93 = vmul.f32 %v88, 1.442695
  %v94 = vpow.pop %v93
  %v95 = vmul.f32 %v89, 1.442695
  %v96 = vpow.pop %v95
  %v97 = vmul.f32 %v90, 1.442695
  %v98 = vpow.pop %v97
  %v99 = vadd.f32 %v92, 1.0
  %v100 = vadd.f32 %v94, 1.0
  %v101 = vadd.f32 %v96, 1.0
  %v102 = vadd.f32 %v98, 1.0
  %v103 = vrcp.pop %v99
  %v104 = vmul.f32 %v99, %v103
  %v105 = vsub.f32 1.0, %v104
  %v106 = vmul.f32 %v103, %v105
  %v107 = vadd.f32 %v103, %v106
  %vm108 = vweird.f32 %v99
  %vm109 = vweird.f32 %v103
  %vm110 = vmor %vm108, %vm109
  %v111 = vsel %vm110, %v103, %v107
  %v112 = vand.u32 2147483647, %v99
  %vm113 = vcmp.eq.f32.partialorder %v112, 8.507059e+37
  %v114 = vand.u32 %v99, 2147483648
  %v115 = vor.u32 1.1754944e-38, %v114
  %v116 = vsel %vm113, %v115, %v111
  %v117 = vmul.f32 1.0, %v116
  %v118 = vrcp.pop %v100
  %v119 = vmul.f32 %v100, %v118
  %v120 = vsub.f32 1.0, %v119
  %v121 = vmul.f32 %v118, %v120
  %v122 = vadd.f32 %v118, %v121
  %vm123 = vweird.f32 %v100
  %vm124 = vweird.f32 %v118
  %vm125 = vmor %vm123, %vm124
  %v126 = vsel %vm125, %v118, %v122
  %v127 = vand.u32 2147483647, %v100
  %vm128 = vcmp.eq.f32.partialorder %v127, 8.507059e+37
  %v129 = vand.u32 %v100, 2147483648
  %v130 = vor.u32 1.1754944e-38, %v129
  %v131 = vsel %vm128, %v130, %v126
  %v132 = vmul.f32 1.0, %v131
  %v133 = vrcp.pop %v101
  %v134 = vmul.f32 %v101, %v133
  %v135 = vsub.f32 1.0, %v134
  %v136 = vmul.f32 %v133, %v135
  %v137 = vadd.f32 %v133, %v136
  %vm138 = vweird.f32 %v101
  %vm139 = vweird.f32 %v133
  %vm140 = vmor %vm138, %vm139
  %v141 = vsel %vm140, %v133, %v137
  %v142 = vand.u32 2147483647, %v101
  %vm143 = vcmp.eq.f32.partialorder %v142, 8.507059e+37
  %v144 = vand.u32 %v101, 2147483648
  %v145 = vor.u32 1.1754944e-38, %v144
  %v146 = vsel %vm143, %v145, %v141
  %v147 = vmul.f32 1.0, %v146
  %v148 = vrcp.pop %v102
  %v149 = vmul.f32 %v102, %v148
  %v150 = vsub.f32 1.0, %v149
  %v151 = vmul.f32 %v148, %v150
  %v152 = vadd.f32 %v148, %v151
  %vm153 = vweird.f32 %v102
  %vm154 = vweird.f32 %v148
  %vm155 = vmor %vm153, %vm154
  %v156 = vsel %vm155, %v148, %v152
  %v157 = vand.u32 2147483647, %v102
  %vm158 = vcmp.eq.f32.partialorder %v157, 8.507059e+37
  %v159 = vand.u32 %v102, 2147483648
  %v160 = vor.u32 1.1754944e-38, %v159
  %v161 = vsel %vm158, %v160, %v156
  %v162 = vmul.f32 1.0, %v161
  %vm163 = vcmask 261120
  %v164 = vsel %vm163, %v117, 0.0
  %165 = vadd.xlane.f32.xlu0 %v164
  %v166 = vpop.xlane.xlu0 %165
  %v167 = vsel %vm163, %v132, 0.0
  %168 = vadd.xlane.f32.xlu0 %v167
  %v169 = vpop.xlane.xlu0 %168
  %v170 = vsel %vm163, %v147, 0.0
  %171 = vadd.xlane.f32.xlu0 %v170
  %v172 = vpop.xlane.xlu0 %171
  %v173 = vsel %vm163, %v162, 0.0
  %174 = vadd.xlane.f32.xlu0 %v173
  %v175 = vpop.xlane.xlu0 %174
  %v176 = vmul.f32 %v117, %v117
  %v177 = vmul.f32 %v132, %v132
  %v178 = vmul.f32 %v147, %v147
  %v179 = vmul.f32 %v162, %v162
  %v180 = vsel %vm163, %v176, 0.0
  %181 = vadd.xlane.f32.xlu0 %v180
  %v182 = vpop.xlane.xlu0 %181
  %v183 = vsel %vm163, %v177, 0.0
  %184 = vadd.xlane.f32.xlu0 %v183
  %v185 = vpop.xlane.xlu0 %184
  %v186 = vsel %vm163, %v178, 0.0
  %187 = vadd.xlane.f32.xlu0 %v186
  %v188 = vpop.xlane.xlu0 %187
  %v189 = vsel %vm163, %v179, 0.0
  %190 = vadd.xlane.f32.xlu0 %v189
  %v191 = vpop.xlane.xlu0 %190
  %vm192 = vcmask 7168
  %v193 = vsel %vm192, %v166, %v182
  %v194 = vsel %vm192, %v169, %v185
  %v195 = vsel %vm192, %v172, %v188
  %v196 = vsel %vm192, %v175, %v191
  %v197 = vld [vmem:[%s3] sm:$0xff]
  %v199 = vsel %vm163, %v197, 0
  %201 = vmatpush.msra.mxu0 0.0
  %202 = vmatpush.msra.mxu0 0.0
  %203 = vmatpush.msra.mxu0 0.0
  %204 = vmatpush.msra.mxu0 0.0
  %205 = vmatpush.msra.mxu0 0.0
  %206 = vmatpush.msra.mxu0 0.0
  %207 = vmatpush.msra.mxu0 0.0
  %208 = vmatpush.msra.mxu0 0.0
  %209 = vmatpush.msra.mxu0 0.0
  %210 = vmatpush.msra.mxu0 0.0
  %211 = vmatpush.msra.mxu0 0.0
  %212 = vmatpush.msra.mxu0 0.0
  %213 = vmatpush.msra.mxu0 %v196
  %214 = vmatpush.msra.mxu0 %v195
  %215 = vmatpush.msra.mxu0 %v194
  %216 = vmatpush.msra.mxu0 %v193
  %217 = vmatmul.f32.gmra.mxu0 %v199
  %v218 = vpop.f32.mrf.mxu0
  %v219 = vadd.f32 0.0, %v218
  %220 = vdwg.mxu0
  %v221 = vld [vmem:[%s4] sm:$0xff]
  %v222 = vld [vmem:[%s4 + $0x8] sm:$0xff]
  %v223 = vld [vmem:[%s4 + $0x10] sm:$0xff]
  %v224 = vld [vmem:[%s4 + $0x18] sm:$0xff]
  %v226 = vsel %vm45, %v221, 0
  %v229 = vsel %vm45, %v222, 0
  %v232 = vsel %vm45, %v223, 0
  %v235 = vsel %vm45, %v224, 0
  %237 = vmatpush.msra.mxu0 0.0
  %238 = vmatpush.msra.mxu0 0.0
  %239 = vmatpush.msra.mxu0 0.0
  %240 = vmatpush.msra.mxu0 0.0
  %241 = vmatpush.msra.mxu0 0.0
  %242 = vmatpush.msra.mxu0 0.0
  %243 = vmatpush.msra.mxu0 0.0
  %244 = vmatpush.msra.mxu0 0.0
  %245 = vmatpush.msra.mxu0 0.0
  %246 = vmatpush.msra.mxu0 0.0
  %247 = vmatpush.msra.mxu0 0.0
  %248 = vmatpush.msra.mxu0 0.0
  %249 = vmatpush.msra.mxu0 0.0
  %250 = vmatpush.msra.mxu0 0.0
  %251 = vmatpush.msra.mxu0 0.0
  %252 = vmatpush.msra.mxu0 %v219
  %253 = vmatmul.f32.gmra.mxu0 %v226
  %v254 = vpop.f32.mrf.mxu0
  %v255 = vadd.f32 0.0, %v254
  %256 = vmatmul.f32.gmra.mxu0 %v229
  %v257 = vpop.f32.mrf.mxu0
  %v258 = vadd.f32 0.0, %v257
  %259 = vmatmul.f32.gmra.mxu0 %v232
  %v260 = vpop.f32.mrf.mxu0
  %v261 = vadd.f32 0.0, %v260
  %262 = vmatmul.f32.gmra.mxu0 %v235
  %v263 = vpop.f32.mrf.mxu0
  %v264 = vadd.f32 0.0, %v263
  %265 = vdwg.mxu0
  %v266 = vmul.f32 %v255, %v255
  %v267 = vmul.f32 %v258, %v258
  %v268 = vmul.f32 %v261, %v261
  %v269 = vmul.f32 %v264, %v264
  %274 = vrot.lane.b32.xlu0 %v266, 1
  %v275 = vpop.permute.xlu0 %274
  %276 = vrot.lane.b32.xlu0 %v267, 1
  %v277 = vpop.permute.xlu0 %276
  %278 = vrot.lane.b32.xlu0 %v268, 1
  %v279 = vpop.permute.xlu0 %278
  %280 = vrot.lane.b32.xlu0 %v269, 1
  %v281 = vpop.permute.xlu0 %280
  %v286 = vsub.f32 %v255, %v275
  %v287 = vsub.f32 %v258, %v277
  %v288 = vsub.f32 %v261, %v279
  %v289 = vsub.f32 %v264, %v281
  %291 = vset.pattern.permute.xlu0 0
  %292 = vperm.xlu0 %291, %v255
  %v293 = vpop.permute.xlu0 %292
  %296 = vset.pattern.permute.xlu0 0
  %297 = vperm.xlu0 %296, %v258
  %v298 = vpop.permute.xlu0 %297
  %301 = vset.pattern.permute.xlu0 0
  %302 = vperm.xlu0 %301, %v261
  %v303 = vpop.permute.xlu0 %302
  %306 = vset.pattern.permute.xlu0 0
  %307 = vperm.xlu0 %306, %v264
  %v308 = vpop.permute.xlu0 %307
  %v310 = vsub.f32 %v117, %v293
  %v311 = vsub.f32 %v132, %v298
  %v312 = vsub.f32 %v147, %v303
  %v313 = vsub.f32 %v162, %v308
  %v314 = vadd.f32 %v286, 32.0
  %v315 = vadd.f32 %v287, 32.0
  %v316 = vadd.f32 %v288, 32.0
  %v317 = vadd.f32 %v289, 32.0
  %v318 = vrsqrt.pop %v314
  %v319 = vmul.f32 %v318, %v314
  %v320 = vmul.f32 %v319, %v318
  %v321 = vmul.f32 0.5, %v320
  %v322 = vsub.f32 1.5, %v321
  %v323 = vmul.f32 %v318, %v322
  %vm324 = vweird.f32 %v314
  %vm325 = vweird.f32 %v318
  %vm326 = vmor %vm324, %vm325
  %v327 = vsel %vm326, %v318, %v323
  %v328 = vrsqrt.pop %v315
  %v329 = vmul.f32 %v328, %v315
  %v330 = vmul.f32 %v329, %v328
  %v331 = vmul.f32 0.5, %v330
  %v332 = vsub.f32 1.5, %v331
  %v333 = vmul.f32 %v328, %v332
  %vm334 = vweird.f32 %v315
  %vm335 = vweird.f32 %v328
  %vm336 = vmor %vm334, %vm335
  %v337 = vsel %vm336, %v328, %v333
  %v338 = vrsqrt.pop %v316
  %v339 = vmul.f32 %v338, %v316
  %v340 = vmul.f32 %v339, %v338
  %v341 = vmul.f32 0.5, %v340
  %v342 = vsub.f32 1.5, %v341
  %v343 = vmul.f32 %v338, %v342
  %vm344 = vweird.f32 %v316
  %vm345 = vweird.f32 %v338
  %vm346 = vmor %vm344, %vm345
  %v347 = vsel %vm346, %v338, %v343
  %v348 = vrsqrt.pop %v317
  %v349 = vmul.f32 %v348, %v317
  %v350 = vmul.f32 %v349, %v348
  %v351 = vmul.f32 0.5, %v350
  %v352 = vsub.f32 1.5, %v351
  %v353 = vmul.f32 %v348, %v352
  %vm354 = vweird.f32 %v317
  %vm355 = vweird.f32 %v348
  %vm356 = vmor %vm354, %vm355
  %v357 = vsel %vm356, %v348, %v353
  %359 = vset.pattern.permute.xlu0 1
  %360 = vperm.xlu0 %359, %v327
  %v361 = vpop.permute.xlu0 %360
  %364 = vset.pattern.permute.xlu0 1
  %365 = vperm.xlu0 %364, %v337
  %v366 = vpop.permute.xlu0 %365
  %369 = vset.pattern.permute.xlu0 1
  %370 = vperm.xlu0 %369, %v347
  %v371 = vpop.permute.xlu0 %370
  %374 = vset.pattern.permute.xlu0 1
  %375 = vperm.xlu0 %374, %v357
  %v376 = vpop.permute.xlu0 %375
  %v378 = vmul.f32 %v310, %v361
  %v379 = vmul.f32 %v311, %v366
  %v380 = vmul.f32 %v312, %v371
  %v381 = vmul.f32 %v313, %v376
  %v382 = vld [vmem:[%s5] sm:$0xff]
  %v383 = vld [vmem:[%s5 + $0x8] sm:$0xff]
  %v384 = vld [vmem:[%s5 + $0x10] sm:$0xff]
  %v385 = vld [vmem:[%s5 + $0x18] sm:$0xff]
  %v386 = vld [vmem:[%s6] sm:$0x1]
  %v388 = vperm.slane %v386, 0
  %v391 = vsel %vm163, %v378, 0
  %v394 = vsel %vm163, %v379, 0
  %v397 = vsel %vm163, %v380, 0
  %v400 = vsel %vm163, %v381, 0
  %402 = vmatpush.msra.mxu0 0.0
  %403 = vmatpush.msra.mxu0 0.0
  %404 = vmatpush.msra.mxu0 0.0
  %405 = vmatpush.msra.mxu0 0.0
  %406 = vmatpush.msra.mxu0 0.0
  %407 = vmatpush.msra.mxu0 0.0
  %408 = vmatpush.msra.mxu0 0.0
  %409 = vmatpush.msra.mxu0 0.0
  %410 = vmatpush.msra.mxu0 0.0
  %411 = vmatpush.msra.mxu0 0.0
  %412 = vmatpush.msra.mxu0 0.0
  %413 = vmatpush.msra.mxu0 0.0
  %414 = vmatpush.msra.mxu0 %v385
  %415 = vmatpush.msra.mxu0 %v384
  %416 = vmatpush.msra.mxu0 %v383
  %417 = vmatpush.msra.mxu0 %v382
  %418 = vmatmul.f32.gmra.mxu0 %v391
  %v419 = vpop.f32.mrf.mxu0
  %v420 = vadd.f32 %v388, %v419
  %421 = vmatmul.f32.gmra.mxu0 %v394
  %v422 = vpop.f32.mrf.mxu0
  %v423 = vadd.f32 %v388, %v422
  %424 = vmatmul.f32.gmra.mxu0 %v397
  %v425 = vpop.f32.mrf.mxu0
  %v426 = vadd.f32 %v388, %v425
  %427 = vmatmul.f32.gmra.mxu0 %v400
  %v428 = vpop.f32.mrf.mxu0
  %v429 = vadd.f32 %v388, %v428
  %430 = vdwg.mxu0
  %v431 = vmax.f32 %v420, 0.0
  %v432 = vmax.f32 %v423, 0.0
  %v433 = vmax.f32 %v426, 0.0
  %v434 = vmax.f32 %v429, 0.0
  %439 = vrot.lane.b32.xlu0 %v420, 96
  %v440 = vpop.permute.xlu0 %439
  %441 = vrot.lane.b32.xlu0 %v423, 96
  %v442 = vpop.permute.xlu0 %441
  %443 = vrot.lane.b32.xlu0 %v426, 96
  %v444 = vpop.permute.xlu0 %443
  %445 = vrot.lane.b32.xlu0 %v429, 96
  %v446 = vpop.permute.xlu0 %445
  %v451 = vadd.f32 %v76, %v440
  %v452 = vadd.f32 %v79, %v442
  %v453 = vadd.f32 %v82, %v444
  %v454 = vadd.f32 %v85, %v446
  %v455 = vld [vmem:[%s7] sm:$0xff]
  %v456 = vld [vmem:[%s7 + $0x8] sm:$0xff]
  %v457 = vld [vmem:[%s7 + $0x10] sm:$0xff]
  %v458 = vld [vmem:[%s7 + $0x18] sm:$0xff]
  %v459 = vld [vmem:[%s7 + $0x20] sm:$0xff]
  %v460 = vld [vmem:[%s7 + $0x28] sm:$0xff]
  %v461 = vld [vmem:[%s7 + $0x30] sm:$0xff]
  %v462 = vld [vmem:[%s7 + $0x38] sm:$0xff]
  %vm463 = vcmask 523264
  %v465 = vsel %vm463, %v431, 0
  %v468 = vsel %vm463, %v432, 0
  %v471 = vsel %vm463, %v433, 0
  %v474 = vsel %vm463, %v434, 0
  %476 = vmatpush.msra.mxu0 0.0
  %477 = vmatpush.msra.mxu0 0.0
  %478 = vmatpush.msra.mxu0 0.0
  %479 = vmatpush.msra.mxu0 0.0
  %480 = vmatpush.msra.mxu0 0.0
  %481 = vmatpush.msra.mxu0 0.0
  %482 = vmatpush.msra.mxu0 0.0
  %483 = vmatpush.msra.mxu0 0.0
  %484 = vmatpush.msra.mxu0 %v462
  %485 = vmatpush.msra.mxu0 %v461
  %486 = vmatpush.msra.mxu0 %v460
  %487 = vmatpush.msra.mxu0 %v459
  %488 = vmatpush.msra.mxu0 %v458
  %489 = vmatpush.msra.mxu0 %v457
  %490 = vmatpush.msra.mxu0 %v456
  %491 = vmatpush.msra.mxu0 %v455
  %492 = vmatmul.f32.gmra.mxu0 %v465
  %v493 = vpop.f32.mrf.mxu0
  %v494 = vadd.f32 0.0, %v493
  %495 = vmatmul.f32.gmra.mxu0 %v468
  %v496 = vpop.f32.mrf.mxu0
  %v497 = vadd.f32 0.0, %v496
  %498 = vmatmul.f32.gmra.mxu0 %v471
  %v499 = vpop.f32.mrf.mxu0
  %v500 = vadd.f32 0.0, %v499
  %501 = vmatmul.f32.gmra.mxu0 %v474
  %v502 = vpop.f32.mrf.mxu0
  %v503 = vadd.f32 0.0, %v502
  %504 = vdwg.mxu0
  %509 = vrot.lane.b32.xlu0 %v494, 32
  %v510 = vpop.permute.xlu0 %509
  %511 = vrot.lane.b32.xlu0 %v497, 32
  %v512 = vpop.permute.xlu0 %511
  %513 = vrot.lane.b32.xlu0 %v500, 32
  %v514 = vpop.permute.xlu0 %513
  %515 = vrot.lane.b32.xlu0 %v503, 32
  %v516 = vpop.permute.xlu0 %515
  %v521 = vadd.f32 %v451, %v510
  %v522 = vadd.f32 %v452, %v512
  %v523 = vadd.f32 %v453, %v514
  %v524 = vadd.f32 %v454, %v516
  %v525 = vld [vmem:[%s8] sm:$0xf]
  %s526 = sld [smem:[#allocation2]]
  %v527 = vstv %s526
  %532 = vrot.lane.b32.xlu0 %v521, 96
  %v533 = vpop.permute.xlu0 %532
  %534 = vrot.lane.b32.xlu0 %v522, 96
  %v535 = vpop.permute.xlu0 %534
  %536 = vrot.lane.b32.xlu0 %v523, 96
  %v537 = vpop.permute.xlu0 %536
  %538 = vrot.lane.b32.xlu0 %v524, 96
  %v539 = vpop.permute.xlu0 %538
  %v545 = vsel %vm163, %v525, 0
  %547 = vmatpush.msra.mxu0 0.0
  %548 = vmatpush.msra.mxu0 0.0
  %549 = vmatpush.msra.mxu0 0.0
  %550 = vmatpush.msra.mxu0 0.0
  %551 = vmatpush.msra.mxu0 0.0
  %552 = vmatpush.msra.mxu0 0.0
  %553 = vmatpush.msra.mxu0 0.0
  %554 = vmatpush.msra.mxu0 0.0
  %555 = vmatpush.msra.mxu0 0.0
  %556 = vmatpush.msra.mxu0 0.0
  %557 = vmatpush.msra.mxu0 0.0
  %558 = vmatpush.msra.mxu0 0.0
  %559 = vmatpush.msra.mxu0 %v539
  %560 = vmatpush.msra.mxu0 %v537
  %561 = vmatpush.msra.mxu0 %v535
  %562 = vmatpush.msra.mxu0 %v533
  %563 = vmatmul.f32.gmra.mxu0 %v545
  %v564 = vpop.f32.mrf.mxu0
  %v565 = vadd.f32 %v527, %v564
  %566 = vdwg.mxu0
  %vm567 = vcmask 3072
  %568 = vst.msk [vmem:[%s10] sm:$0xf] %vm567, %v565
  // Predicated region
  $region42: #{wo1_mixing_forward.1} parent=0 // pred_check
    _
  $region43: #{wo1_mixing_forward.1} parent=0 // pred_check_branch
    %570 = sbr.rel (0) target = $region45
  $region44: #{wo1_mixing_forward.1} parent=0 // pred_region
    _
  $region45: #{wo1_mixing_forward.1} parent=0 // pred_fallthru
    _
  // Predicated region
  $region46: #{wo1_mixing_forward.1} parent=0 // pred_check
    _
  $region47: #{wo1_mixing_forward.1} parent=0 // pred_check_branch
    %572 = sbr.rel (0) target = $region49
  $region48: #{wo1_mixing_forward.1} parent=0 // pred_region
    _
  $region49: #{wo1_mixing_forward.1} parent=0 // pred_fallthru
    _

</llo_original>
